<compile_context>
chip_gen: v7x
topology: tpu7x:2x2x1
jax: 0.10.0
libtpu: 0.0.40
codegen_flags: <defaults>
</compile_context>

<pallas_src>
import jax
import jax.numpy as jnp
from jax.experimental import pallas as pl
from jax.experimental.pallas import tpu as pltpu


def _round_up(x, m):
    return ((x + m - 1) // m) * m


def _choose_row_tile(M, max_tile=256):
    """Row tile (multiple of 16 for bf16 sublane packing) minimizing M padding."""
    if M <= max_tile:
        tm = _round_up(M, 16)
        return tm, tm
    best_tm, best_pad = None, None
    for tm in range(max_tile, 15, -16):
        m_pad = _round_up(M, tm)
        if best_pad is None or m_pad < best_pad or (m_pad == best_pad and tm > best_tm):
            best_tm, best_pad = tm, m_pad
    return best_tm, best_pad


def _largest_divisor_leq(n, cap):
    for d in range(min(n, cap), 0, -1):
        if n % d == 0:
            return d
    return 1


def patch_embedding(x, weight, bias, cls_token, positions, patch_size,
                    out_dtype=jnp.float32):
    """x: (B, C, H, W) f32. weight: (E, C, P, P). bias: (E,).
    cls_token: (1, 1, E). positions: (1, N+1, E). Returns (B, N+1, E) out_dtype."""
    B, C, H, W = x.shape
    P = patch_size
    E = weight.shape[0]
    nh, nw = H // P, W // P
    N = nh * nw
    K = C * P * P
    M = N + 1  # cls row is produced inside the kernel

    # ---- wrapper glue: one fused layout pass (transpose + cast), then pad ---
    # TODO(synk): fuse patch extraction + bf16 cast into the kernel (grid over
    # (B, nh) on raw NCHW row-strips) to avoid this extra HBM pass over the image.
    patches = (
        x.reshape(B, C, nh, P, nw, P)
        .transpose(0, 2, 4, 1, 3, 5)
        .reshape(B, N, K)
        .astype(jnp.bfloat16)
    )

    # Lane-dense padding only where needed (K/E already aligned for std ViT dims).
    Kp = _round_up(K, 128)
    Ep = _round_up(E, 128)
    TM, M_pad = _choose_row_tile(M)
    grid_m = M_pad // TM

    # Prepend the (zero) cls patch row; its projection is 0, so out row 0 is
    # exactly pos row 0 = cls_token + positions[0].
    patches_p = jnp.pad(patches, ((0, 0), (1, M_pad - M), (0, Kp - K)))

    w_p = jnp.pad(weight.reshape(E, K).T.astype(jnp.bfloat16),
                  ((0, Kp - K), (0, Ep - E)))

    # Positional table: bias folded into the projected-patch rows only; the cls
    # row gets cls_token + positions[0] with NO bias.
    pos = positions.reshape(M, E).astype(jnp.float32)
    row0 = pos[0:1] + cls_token.reshape(1, E).astype(jnp.float32)
    body = pos[1:] + bias.reshape(1, E).astype(jnp.float32)
    pos_p = jnp.pad(jnp.concatenate([row0, body], axis=0),
                    ((0, M_pad - M), (0, Ep - E)))

    # Multi-batch blocks per grid step (amortize per-step pipeline overhead),
    # sized against a v7x-safe VMEM budget.
    out_itemsize = jnp.dtype(out_dtype).itemsize
    TB = _largest_divisor_leq(B, 4)

    def vmem_need(tb):
        return (
            2 * Kp * Ep * 2                    # weight (bf16), count double-buffered
            + 2 * M_pad * Ep * 4               # resident pos table (f32), count 2x
            + 2 * tb * TM * Kp * 2             # patch tile, double-buffered (bf16)
            + 2 * tb * TM * Ep * out_itemsize  # output tile, double-buffered
        )

    VMEM_BUDGET = 48 * 1024 * 1024             # safe on v7x's 64 MiB per TC
    while TB > 1 and vmem_need(TB) > VMEM_BUDGET:
        TB = _largest_divisor_leq(B, TB - 1)
    grid_b = B // TB

    vmem_limit = int(min(max(vmem_need(TB) * 3 // 2, 4 * 1024 * 1024),
                         64 * 1024 * 1024))

    def kernel(patches_ref, w_ref, pos_ref, out_ref):
        # patches_ref: (TB, TM, Kp) bf16   current (batch-block, row-tile)
        # w_ref:       (Kp, Ep)     bf16   flattened conv weight, VMEM-resident
        # pos_ref:     (M_pad, Ep)  f32    full pos(+bias/cls) table, VMEM-resident
        # out_ref:     (TB, TM, Ep) out_dtype
        m = pl.program_id(1)
        start = pl.multiple_of(m * TM, TM)
        pos_tile = pos_ref[pl.ds(start, TM), :]                 # (TM, Ep) f32
        p = patches_ref[...].reshape(TB * TM, Kp)               # layout-trivial merge
        proj = jnp.dot(p, w_ref[...], preferred_element_type=jnp.float32)
        proj = proj.reshape(TB, TM, Ep) + pos_tile              # f32 add (VPU)
        out_ref[...] = proj.astype(out_ref.dtype)               # aligned full-block store

    out_p = pl.pallas_call(
        kernel,
        out_shape=jax.ShapeDtypeStruct((B, M_pad, Ep), out_dtype),
        grid_spec=pltpu.PrefetchScalarGridSpec(
            num_scalar_prefetch=0,
            grid=(grid_b, grid_m),
            in_specs=[
                pl.BlockSpec((TB, TM, Kp), lambda b, m: (b, m, 0)),
                pl.BlockSpec((Kp, Ep), lambda b, m: (0, 0)),
                pl.BlockSpec((M_pad, Ep), lambda b, m: (0, 0)),
            ],
            out_specs=pl.BlockSpec((TB, TM, Ep), lambda b, m: (b, m, 0)),
        ),
        compiler_params=pltpu.CompilerParams(
            dimension_semantics=("parallel", "parallel"),
            vmem_limit_bytes=vmem_limit,
        ),
    )(patches_p, w_p, pos_p)

    # Strip row/lane padding; the cls row is already row 0 of the kernel output.
    return out_p[:, :M, :E]


def patch_embedding_ref(x, weight, bias, cls_token, positions, patch_size):
    """Pure-JAX f32 reference mirroring the PyTorch forward."""
    B, C, H, W = x.shape
    P = patch_size
    E = weight.shape[0]
    nh, nw = H // P, W // P
    N = nh * nw
    K = C * P * P
    patches = x.reshape(B, C, nh, P, nw, P).transpose(0, 2, 4, 1, 3, 5)
    patches = patches.reshape(B, N, K)
    proj = patches @ weight.reshape(E, K).T + bias  # (B, N, E)
    cls = jnp.broadcast_to(cls_token, (B, 1, E))
    seq = jnp.concatenate([cls, proj], axis=1)
    return seq + positions


if __name__ == "__main__":
    # Small shapes consistent with the module: img=16, patch=4, C=4, E=32, B=2
    B, C, H, W = 2, 4, 16, 16
    P = 4
    E = 32
    N = (H // P) * (W // P)

    key = jax.random.PRNGKey(0)
    kx, kw, kb, kc, kp = jax.random.split(key, 5)
    x = jax.random.normal(kx, (B, C, H, W), dtype=jnp.float32)
    weight = jax.random.normal(kw, (E, C, P, P), dtype=jnp.float32) * 0.05
    bias = jax.random.normal(kb, (E,), dtype=jnp.float32) * 0.05
    # (module __init__ zero-inits these; use small random values to exercise the adds)
    cls_token = jax.random.normal(kc, (1, 1, E), dtype=jnp.float32) * 0.02
    positions = jax.random.normal(kp, (1, N + 1, E), dtype=jnp.float32) * 0.02

    out = patch_embedding(x, weight, bias, cls_token, positions, P)
    out = jax.block_until_ready(out)

    ref = patch_embedding_ref(x, weight, bias, cls_token, positions, P)
    assert out.shape == (B, N + 1, E), out.shape
    # bf16 MXU inputs with f32 accumulation -> tolerance appropriate for bf16.
    assert jnp.allclose(out, ref, atol=3e-2, rtol=3e-2), "mismatch vs reference"

    print("KERNEL_OK")
</pallas_src>

<mosaic_0001>
module attributes {stable_mosaic.version = 11 : i64} {
  func.func @kernel(%arg0: i32, %arg1: i32, %arg2: memref<2x32x128xbf16, #tpu.memory_space<vmem>>, %arg3: memref<128x128xbf16, #tpu.memory_space<vmem>>, %arg4: memref<32x128xf32, #tpu.memory_space<vmem>>, %arg5: memref<2x32x128xf32, #tpu.memory_space<vmem>>) attributes {dimension_semantics = [#tpu.dimension_semantics<parallel>, #tpu.dimension_semantics<parallel>], iteration_bounds = array<i64: 1, 1>, scalar_prefetch = 0 : i64, scratch_operands = 0 : i64, tpu.core_type = #tpu.core_type<tc>, window_params = [{transform_indices = @transform_0, window_bounds = array<i64: 2, 32, 128>}, {pipeline_mode = #tpu.pipeline_mode<synchronous>, transform_indices = @transform_1, window_bounds = array<i64: 128, 128>}, {pipeline_mode = #tpu.pipeline_mode<synchronous>, transform_indices = @transform_2, window_bounds = array<i64: 32, 128>}, {transform_indices = @transform_3, window_bounds = array<i64: 2, 32, 128>}]} {
    %c32_i32 = arith.constant 32 : i32
    %0 = arith.muli %arg1, %c32_i32 : i32
    %1 = tpu.assume_multiple %0, 32 : i32
    %2 = arith.index_cast %1 : i32 to index
    %c0 = arith.constant 0 : index
    %3 = vector.load %arg4[%2, %c0] : memref<32x128xf32, #tpu.memory_space<vmem>>, vector<32x128xf32>
    %c0_0 = arith.constant 0 : index
    %c0_1 = arith.constant 0 : index
    %c0_2 = arith.constant 0 : index
    %4 = vector.load %arg2[%c0_0, %c0_1, %c0_2] : memref<2x32x128xbf16, #tpu.memory_space<vmem>>, vector<2x32x128xbf16>
    %5 = vector.shape_cast %4 : vector<2x32x128xbf16> to vector<64x128xbf16>
    %c0_3 = arith.constant 0 : index
    %c0_4 = arith.constant 0 : index
    %6 = vector.load %arg3[%c0_3, %c0_4] : memref<128x128xbf16, #tpu.memory_space<vmem>>, vector<128x128xbf16>
    %cst = arith.constant dense<0.000000e+00> : vector<64x128xf32>
    %7 = tpu.matmul %5, %6, %cst {dimension_numbers = #tpu.dot_dimension_numbers<[1], [0], [0], [1], [0, 0, 1, 1], [], []>} : vector<64x128xbf16>, vector<128x128xbf16>, vector<64x128xf32> -> vector<64x128xf32>
    %8 = vector.shape_cast %7 : vector<64x128xf32> to vector<2x32x128xf32>
    %9 = vector.shape_cast %3 : vector<32x128xf32> to vector<1x32x128xf32>
    %10 = vector.broadcast %9 : vector<1x32x128xf32> to vector<2x32x128xf32>
    %11 = arith.addf %8, %10 : vector<2x32x128xf32>
    %c0_5 = arith.constant 0 : index
    %c0_6 = arith.constant 0 : index
    %c0_7 = arith.constant 0 : index
    %12 = vector.load %arg5[%c0_5, %c0_6, %c0_7] : memref<2x32x128xf32, #tpu.memory_space<vmem>>, vector<2x32x128xf32>
    tpu.vector_store %arg5[%c0_5, %c0_6, %c0_7], %11 {strides = array<i32>} : memref<2x32x128xf32, #tpu.memory_space<vmem>>, vector<2x32x128xf32>,
    return
  }
  func.func @transform_0(%arg0: i32, %arg1: i32) -> (i32, i32, i32) {
    %c0_i32 = arith.constant 0 : i32
    %c0_i32_0 = arith.constant 0 : i32
    return %arg0, %arg1, %c0_i32 : i32, i32, i32
  }
  func.func @transform_1(%arg0: i32, %arg1: i32) -> (i32, i32) {
    %c0_i32 = arith.constant 0 : i32
    %c0_i32_0 = arith.constant 0 : i32
    %c0_i32_1 = arith.constant 0 : i32
    return %c0_i32, %c0_i32_0 : i32, i32
  }
  func.func @transform_2(%arg0: i32, %arg1: i32) -> (i32, i32) {
    %c0_i32 = arith.constant 0 : i32
    %c0_i32_0 = arith.constant 0 : i32
    %c0_i32_1 = arith.constant 0 : i32
    return %c0_i32, %c0_i32_0 : i32, i32
  }
  func.func @transform_3(%arg0: i32, %arg1: i32) -> (i32, i32, i32) {
    %c0_i32 = arith.constant 0 : i32
    %c0_i32_0 = arith.constant 0 : i32
    return %arg0, %arg1, %c0_i32 : i32, i32, i32
  }
}

</mosaic_0001>

<llo_original>
// kernel: tpu_custom_call.1
$region0: #{tpu_custom_call.1}
  #allocation0 [shape = 'u32[]', space=smem, size = 0x4, offset = 0x4, fixed_abs, tag = 'smem constant byte address 0x4 - core index']
  #allocation1 [shape = 'u32[144,128]{1,0:T(1,128)}', space=vmem, size = 0x12000, scoped, tag = 'internal scratch']
  %s0 = inlined_call_operand.hbm [shape: bf16[2,32,128], index: 0, kind: input, shape index: {}]
  %s1 = inlined_call_operand.hbm [shape: bf16[128,128], index: 1, kind: input, shape index: {}]
  %s2 = inlined_call_operand.hbm [shape: f32[32,128], index: 2, kind: input, shape index: {}]
  %s3 = inlined_call_operand.hbm [shape: f32[2,32,128], index: 3, kind: output, shape index: {}]
  %s4 = sld [smem:[#allocation0]]
  $region34: #{tpu_custom_call.1} parent=0
    _
  %s6 = ssub.s32 1, %s4
  %s7 = scalar_select 0, %s6, %s4
  $region1: #{tpu_custom_call.1} parent=0
    #allocation2 [shape = 'u8[16384]{0}', space=vmem, size = 0x4000, scoped, tag = 'input window, operand 0, single buffered']
    #allocation3 [shape = 's32[1]{0}', space=sflag, size = 0x4, scoped, tag = 'scoped memory for tpu_custom_call.1']
    #allocation4 [shape = 's32[1]{0}', space=sflag, size = 0x4, scoped, tag = 'scoped memory for tpu_custom_call.1']
    #allocation5 [shape = 'u8[32768]{0}', space=vmem, size = 0x8000, scoped, tag = 'input window, operand 1, single buffered']
    #allocation6 [shape = 's32[1]{0}', space=sflag, size = 0x4, scoped, tag = 'scoped memory for tpu_custom_call.1']
    #allocation7 [shape = 'u8[16384]{0}', space=vmem, size = 0x4000, scoped, tag = 'input window, operand 2, single buffered']
    #allocation8 [shape = 'u8[32768]{0}', space=vmem, size = 0x8000, scoped, tag = 'output window, operand 0, single buffered']
    %8 = vsyncpa [#allocation3], 0
    %9 = vsyncpa [#allocation6], 0
    %10 = vsyncpa [#allocation4], 0
    // Predicated region
    $region2: #{tpu_custom_call.1} parent=1 // pred_check
      _
    $region3: #{tpu_custom_call.1} parent=1 // pred_check_branch
      %12 = sbr.rel (0) target = $region5
    $region4: #{tpu_custom_call.1} parent=1 // pred_region
      %s14 = ssub.s32 512, 512
      %15 = vsyncadd [#allocation3], %s14
      %s16 = sshll.u32 [#allocation2], 4
      %s17 = int_to_ptr.vmem [resolvable:$true] %s16
      %22 = dma.hbm_to_vmem [thread:$0]  %s0, 512, %s17, [#allocation3], 64, 64, 4
    $region5: #{tpu_custom_call.1} parent=1 // pred_fallthru
      _
    // Predicated region
    $region6: #{tpu_custom_call.1} parent=1 // pred_check
      _
    $region7: #{tpu_custom_call.1} parent=1 // pred_check_branch
      %24 = sbr.rel (0) target = $region9
    $region8: #{tpu_custom_call.1} parent=1 // pred_region
      %s26 = ssub.s32 1024, 1024
      %27 = vsyncadd [#allocation6], %s26
      %s28 = sshll.u32 [#allocation5], 4
      %s29 = int_to_ptr.vmem [resolvable:$true] %s28
      %34 = dma.hbm_to_vmem [thread:$0]  %s1, 1024, %s29, [#allocation6], 64, 64, 4
    $region9: #{tpu_custom_call.1} parent=1 // pred_fallthru
      _
    // Predicated region
    $region10: #{tpu_custom_call.1} parent=1 // pred_check
      _
    $region11: #{tpu_custom_call.1} parent=1 // pred_check_branch
      %36 = sbr.rel (0) target = $region13
    $region12: #{tpu_custom_call.1} parent=1 // pred_region
      %s38 = ssub.s32 512, 512
      %39 = vsyncadd [#allocation6], %s38
      %s40 = sshll.u32 [#allocation7], 4
      %s41 = int_to_ptr.vmem [resolvable:$true] %s40
      %46 = dma.hbm_to_vmem [thread:$0]  %s2, 512, %s41, [#allocation6], 128, 128, 8
    $region13: #{tpu_custom_call.1} parent=1 // pred_fallthru
      _
    // Predicated region
    $region14: #{tpu_custom_call.1} parent=1 // pred_check
      _
    $region15: #{tpu_custom_call.1} parent=1 // pred_check_branch
      %48 = sbr.rel (0) target = $region17
    $region16: #{tpu_custom_call.1} parent=1 // pred_region
      %49 = dma.done [#allocation3], 512
    $region17: #{tpu_custom_call.1} parent=1 // pred_fallthru
      _
    // Predicated region
    $region18: #{tpu_custom_call.1} parent=1 // pred_check
      _
    $region19: #{tpu_custom_call.1} parent=1 // pred_check_branch
      %51 = sbr.rel (0) target = $region21
    $region20: #{tpu_custom_call.1} parent=1 // pred_region
      %52 = dma.done [#allocation6], 1024
    $region21: #{tpu_custom_call.1} parent=1 // pred_fallthru
      _
    // Predicated region
    $region22: #{tpu_custom_call.1} parent=1 // pred_check
      _
    $region23: #{tpu_custom_call.1} parent=1 // pred_check_branch
      %54 = sbr.rel (0) target = $region25
    $region24: #{tpu_custom_call.1} parent=1 // pred_region
      %55 = dma.done [#allocation6], 512
    $region25: #{tpu_custom_call.1} parent=1 // pred_fallthru
      _
    %s57 = smul.u32 0, 32
    %s58 = scalar_lea.vmem [#allocation7], %s57
    %v59 = vld [vmem:[%s58] sm:$0xff]
    %v60 = vld [vmem:[%s58 + $0x8] sm:$0xff]
    %v61 = vld [vmem:[%s58 + $0x10] sm:$0xff]
    %v62 = vld [vmem:[%s58 + $0x18] sm:$0xff]
    %v63 = vld [vmem:[#allocation2] sm:$0xf]
    %v64 = vld [vmem:[#allocation2 + $0x4] sm:$0xf]
    %v65 = vld [vmem:[#allocation2 + $0x8] sm:$0xf]
    %v66 = vld [vmem:[#allocation2 + $0xc] sm:$0xf]
    %v67 = vld [vmem:[#allocation2 + $0x10] sm:$0xf]
    %v68 = vld [vmem:[#allocation2 + $0x14] sm:$0xf]
    %v69 = vld [vmem:[#allocation2 + $0x18] sm:$0xf]
    %v70 = vld [vmem:[#allocation2 + $0x1c] sm:$0xf]
    %v71 = vld [vmem:[#allocation5] sm:$0xf]
    %v72 = vld [vmem:[#allocation5 + $0x4] sm:$0xf]
    %v73 = vld [vmem:[#allocation5 + $0x8] sm:$0xf]
    %v74 = vld [vmem:[#allocation5 + $0xc] sm:$0xf]
    %v75 = vld [vmem:[#allocation5 + $0x10] sm:$0xf]
    %v76 = vld [vmem:[#allocation5 + $0x14] sm:$0xf]
    %v77 = vld [vmem:[#allocation5 + $0x18] sm:$0xf]
    %v78 = vld [vmem:[#allocation5 + $0x1c] sm:$0xf]
    %v79 = vld [vmem:[#allocation5 + $0x20] sm:$0xf]
    %v80 = vld [vmem:[#allocation5 + $0x24] sm:$0xf]
    %v81 = vld [vmem:[#allocation5 + $0x28] sm:$0xf]
    %v82 = vld [vmem:[#allocation5 + $0x2c] sm:$0xf]
    %v83 = vld [vmem:[#allocation5 + $0x30] sm:$0xf]
    %v84 = vld [vmem:[#allocation5 + $0x34] sm:$0xf]
    %v85 = vld [vmem:[#allocation5 + $0x38] sm:$0xf]
    %v86 = vld [vmem:[#allocation5 + $0x3c] sm:$0xf]
    %v95 = vunpack.c.l.b16 %v63
    %v96 = vunpack.c.l.b16 %v64
    %v97 = vunpack.c.l.b16 %v65
    %v98 = vunpack.c.l.b16 %v66
    %v99 = vunpack.c.l.b16 %v67
    %v100 = vunpack.c.l.b16 %v68
    %v101 = vunpack.c.l.b16 %v69
    %v102 = vunpack.c.l.b16 %v70
    %v103 = vpack.c.b16 %v96, %v95
    %v104 = vpack.c.b16 %v98, %v97
    %v105 = vpack.c.b16 %v100, %v99
    %v106 = vpack.c.b16 %v102, %v101
    %v127 = vunpack.c.l.b16 %v71
    %v128 = vunpack.c.l.b16 %v72
    %v129 = vunpack.c.l.b16 %v73
    %v130 = vunpack.c.l.b16 %v74
    %v131 = vunpack.c.l.b16 %v75
    %v132 = vunpack.c.l.b16 %v76
    %v133 = vunpack.c.l.b16 %v77
    %v134 = vunpack.c.l.b16 %v78
    %v135 = vunpack.c.l.b16 %v79
    %v136 = vunpack.c.l.b16 %v80
    %v137 = vunpack.c.l.b16 %v81
    %v138 = vunpack.c.l.b16 %v82
    %v139 = vunpack.c.l.b16 %v83
    %v140 = vunpack.c.l.b16 %v84
    %v141 = vunpack.c.l.b16 %v85
    %v142 = vunpack.c.l.b16 %v86
    %v143 = vpack.c.b16 %v128, %v127
    %v144 = vpack.c.b16 %v130, %v129
    %v145 = vpack.c.b16 %v132, %v131
    %v146 = vpack.c.b16 %v134, %v133
    %v147 = vpack.c.b16 %v136, %v135
    %v148 = vpack.c.b16 %v138, %v137
    %v149 = vpack.c.b16 %v140, %v139
    %v150 = vpack.c.b16 %v142, %v141
    %159 = vmatprep.subr.bf16.mxu0 0
    %160 = vmatpush1.bf16.msra.mxu0 %v143
    %161 = vmatprep.subr.bf16.mxu0 0
    %162 = vmatpush1.bf16.msra.mxu0 %v144
    %163 = vmatprep.subr.bf16.mxu0 0
    %164 = vmatpush1.bf16.msra.mxu0 %v145
    %165 = vmatprep.subr.bf16.mxu0 0
    %166 = vmatpush1.bf16.msra.mxu0 %v146
    %167 = vmatprep.subr.bf16.mxu0 0
    %168 = vmatpush1.bf16.msra.mxu0 %v147
    %169 = vmatprep.subr.bf16.mxu0 0
    %170 = vmatpush1.bf16.msra.mxu0 %v148
    %171 = vmatprep.subr.bf16.mxu0 0
    %172 = vmatpush1.bf16.msra.mxu0 %v149
    %173 = vmatprep.subr.bf16.mxu0 0
    %174 = vmatpush1.bf16.msra.mxu0 %v150
    %175 = vmatprep.subr.bf16.mxu0 0
    %176 = vmatpush1.bf16.msra.mxu0 0
    %177 = vmatprep.subr.bf16.mxu0 0
    %178 = vmatpush1.bf16.msra.mxu0 0
    %179 = vmatprep.subr.bf16.mxu0 0
    %180 = vmatpush1.bf16.msra.mxu0 0
    %181 = vmatprep.subr.bf16.mxu0 0
    %182 = vmatpush1.bf16.msra.mxu0 0
    %183 = vmatprep.subr.bf16.mxu0 0
    %184 = vmatpush1.bf16.msra.mxu0 0
    %185 = vmatprep.subr.bf16.mxu0 0
    %186 = vmatpush1.bf16.msra.mxu0 0
    %187 = vmatprep.subr.bf16.mxu0 0
    %188 = vmatpush1.bf16.msra.mxu0 0
    %189 = vmatprep.subr.bf16.mxu0 0
    %190 = vmatpush1.bf16.msra.mxu0 0
    %191 = vmatprep.mubr.bf16.mxu0 0
    %192 = vmatmul.mubr.bf16.gmra.mrb[0].mxu0 %v103
    %v193 = vpop.f32.mrb[0].mxu0
    %v194 = vadd.f32 0.0, %v193
    %v195 = vpop.f32.mrb[0].mxu0
    %v196 = vpop.f32.mrb[0].mxu0
    %v197 = vadd.f32 0.0, %v196
    %v198 = vpop.f32.mrb[0].mxu0
    %199 = vmatprep.mubr.bf16.mxu0 0
    %200 = vmatmul.mubr.bf16.gmra.mrb[0].mxu0 %v104
    %v201 = vpop.f32.mrb[0].mxu0
    %v202 = vadd.f32 0.0, %v201
    %v203 = vpop.f32.mrb[0].mxu0
    %v204 = vpop.f32.mrb[0].mxu0
    %v205 = vadd.f32 0.0, %v204
    %v206 = vpop.f32.mrb[0].mxu0
    %207 = vmatprep.mubr.bf16.mxu0 0
    %208 = vmatmul.mubr.bf16.gmra.mrb[0].mxu0 %v105
    %v209 = vpop.f32.mrb[0].mxu0
    %v210 = vadd.f32 0.0, %v209
    %v211 = vpop.f32.mrb[0].mxu0
    %v212 = vpop.f32.mrb[0].mxu0
    %v213 = vadd.f32 0.0, %v212
    %v214 = vpop.f32.mrb[0].mxu0
    %215 = vmatprep.mubr.bf16.mxu0 0
    %216 = vmatmul.mubr.bf16.gmra.mrb[0].mxu0 %v106
    %v217 = vpop.f32.mrb[0].mxu0
    %v218 = vadd.f32 0.0, %v217
    %v219 = vpop.f32.mrb[0].mxu0
    %v220 = vpop.f32.mrb[0].mxu0
    %v221 = vadd.f32 0.0, %v220
    %v222 = vpop.f32.mrb[0].mxu0
    %223 = vdwg.mxu0
    %v224 = vadd.f32 %v194, %v59
    %v225 = vadd.f32 %v197, %v60
    %v226 = vadd.f32 %v202, %v61
    %v227 = vadd.f32 %v205, %v62
    %v228 = vadd.f32 %v210, %v59
    %v229 = vadd.f32 %v213, %v60
    %v230 = vadd.f32 %v218, %v61
    %v231 = vadd.f32 %v221, %v62
    %232 = vst [vmem:[#allocation8] sm:$0xff] %v224
    %233 = vst [vmem:[#allocation8 + $0x8] sm:$0xff] %v225
    %234 = vst [vmem:[#allocation8 + $0x10] sm:$0xff] %v226
    %235 = vst [vmem:[#allocation8 + $0x18] sm:$0xff] %v227
    %236 = vst [vmem:[#allocation8 + $0x20] sm:$0xff] %v228
    %237 = vst [vmem:[#allocation8 + $0x28] sm:$0xff] %v229
    %238 = vst [vmem:[#allocation8 + $0x30] sm:$0xff] %v230
    %239 = vst [vmem:[#allocation8 + $0x38] sm:$0xff] %v231
    // Predicated region
    $region26: #{tpu_custom_call.1} parent=1 // pred_check
      _
    $region27: #{tpu_custom_call.1} parent=1 // pred_check_branch
      %241 = sbr.rel (0) target = $region29
    $region28: #{tpu_custom_call.1} parent=1 // pred_region
      %s243 = ssub.s32 1024, 1024
      %244 = vsyncadd [#allocation4], %s243
      %s245 = sshll.u32 [#allocation8], 4
      %s246 = int_to_ptr.vmem [resolvable:$true] %s245
      %251 = dma.vmem_to_hbm [thread:$0]  %s246, 1024, %s3, [#allocation4], 128, 128, 8
    $region29: #{tpu_custom_call.1} parent=1 // pred_fallthru
      _
    // Predicated region
    $region30: #{tpu_custom_call.1} parent=1 // pred_check
      _
    $region31: #{tpu_custom_call.1} parent=1 // pred_check_branch
      %253 = sbr.rel (0) target = $region33
    $region32: #{tpu_custom_call.1} parent=1 // pred_region
      %254 = dma.done [#allocation4], 1024
    $region33: #{tpu_custom_call.1} parent=1 // pred_fallthru
      _
    %255 = vsyncpa [#allocation3], 1
    %256 = vsyncpa [#allocation6], 1
    %257 = vsyncpa [#allocation4], 1

</llo_original>
